<compile_context>
chip_gen: v5e
topology: v5e:2x2
jax: 0.10.0
libtpu: 0.0.40
codegen_flags: <defaults>
</compile_context>

<pallas_src>
import math
import functools

import jax
import jax.numpy as jnp
from jax.experimental import pallas as pl
from jax.experimental.pallas import tpu as pltpu


def mha_kernel(q_ref, k_ref, v_ref,
               wq_ref, bq_ref, wk_ref, bk_ref, wv_ref, bv_ref,
               wo_ref, bo_ref,
               out_ref,
               k_cache, v_cache, acc_ref, *, scale):
    """One grid step = (batch b, q-tile i, head h); h is the innermost reduction axis."""
    i = pl.program_id(1)          # q-tile index
    h = pl.program_id(2)          # head index

    @pl.when(h == 0)
    def _init_acc():
        acc_ref[...] = jnp.zeros_like(acc_ref)

    x_q = q_ref[0]                # (tq, D)
    mxu_dtype = x_q.dtype         # bf16 in production, f32 in the demo

    # Project K/V for this (batch, head) only once -- at the first q-tile -- and cache
    # the (S, d_k) results in VMEM; every later q-tile of the same batch reuses them.
    @pl.when(i == 0)
    def _project_kv():
        x_k = k_ref[0]            # (S, D)
        x_v = v_ref[0]            # (S, D)
        k_h = jnp.dot(x_k, wk_ref[0], preferred_element_type=jnp.float32) + bk_ref[0]
        v_h = jnp.dot(x_v, wv_ref[0], preferred_element_type=jnp.float32) + bv_ref[0]
        k_cache[h] = k_h.astype(k_cache.dtype)
        v_cache[h] = v_h.astype(v_cache.dtype)

    k_h = k_cache[h]              # (S, d_k)
    v_h = v_cache[h]              # (S, d_k)

    # Per-head Q projection; the 1/sqrt(d_k) scale is folded into Q once here.
    q_h = (jnp.dot(x_q, wq_ref[0], preferred_element_type=jnp.float32) + bq_ref[0]) * scale

    # Scores: contraction on the last axes -> no explicit K transpose is materialized.
    scores = jnp.einsum('qd,kd->qk', q_h.astype(mxu_dtype), k_h,
                        preferred_element_type=jnp.float32)            # (tq, S)

    # Numerically stable softmax, kept in f32 on the VPU/EUP.
    m = jnp.max(scores, axis=-1, keepdims=True)
    p = jnp.exp(scores - m)
    denom = jnp.sum(p, axis=-1, keepdims=True)                          # (tq, 1)

    # Unnormalized context, then normalize the small (tq, d_k) tensor with an EUP
    # reciprocal instead of dividing the (tq, S) probabilities.
    ctx = jnp.dot(p.astype(mxu_dtype), v_h,
                  preferred_element_type=jnp.float32)                   # (tq, d_k)
    ctx = ctx * pl.reciprocal(denom, approx=True)

    # Fold this head straight into the output projection: lane-dense (tq, D) accumulate.
    acc_ref[...] += jnp.dot(ctx.astype(mxu_dtype), wo_ref[0],
                            preferred_element_type=jnp.float32)

    @pl.when(h == pl.num_programs(2) - 1)
    def _finalize():
        out_ref[0] = (acc_ref[...] + bo_ref[...]).astype(out_ref.dtype)


def _pick_q_tile(S):
    # Largest "nice" tile that divides S. Halve for v7x (64 MiB VMEM), 256-align on v6e.
    for t in (512, 256, 128, 64, 32, 16, 8):
        if t <= S and S % t == 0:
            return t
    return S


def multi_headed_attention(q, k, v, params, *, num_heads, q_tile=None):
    """q, k, v: (B, S, D). params: dict of pre-transposed (in, out) weights + (out,) biases."""
    B, S, D = q.shape
    assert D % num_heads == 0, "embedding_dim must be divisible by num_heads"
    H = num_heads
    d_k = D // H

    # Head-major weight layouts so each per-head slab is a whole BlockSpec block.
    def split_w(w):                     # (D, D) [in, out] -> (H, D, d_k)
        return w.reshape(D, H, d_k).transpose(1, 0, 2)

    def split_b(b):                     # (D,) -> (H, 1, d_k)
        return b.reshape(H, 1, d_k)

    wq_h, wk_h, wv_h = split_w(params["wq"]), split_w(params["wk"]), split_w(params["wv"])
    bq_h, bk_h, bv_h = split_b(params["bq"]), split_b(params["bk"]), split_b(params["bv"])
    wo_h = params["wo"].reshape(H, d_k, D)   # rows h*d_k:(h+1)*d_k of W_o
    bo = params["bo"].reshape(1, D)

    if q_tile is None:
        q_tile = _pick_q_tile(S)
    assert S % q_tile == 0
    n_q = S // q_tile
    grid = (B, n_q, H)

    q_spec = pl.BlockSpec((1, q_tile, D), lambda b, i, h: (b, i, 0))
    kv_spec = pl.BlockSpec((1, S, D), lambda b, i, h: (b, 0, 0))    # resident per batch
    w_spec = pl.BlockSpec((1, D, d_k), lambda b, i, h: (h, 0, 0))
    b_spec = pl.BlockSpec((1, 1, d_k), lambda b, i, h: (h, 0, 0))
    wo_spec = pl.BlockSpec((1, d_k, D), lambda b, i, h: (h, 0, 0))
    bo_spec = pl.BlockSpec((1, D), lambda b, i, h: (0, 0))
    out_spec = pl.BlockSpec((1, q_tile, D), lambda b, i, h: (b, i, 0))

    itemsize = q.dtype.itemsize
    cost = pl.CostEstimate(
        flops=8 * B * S * D * D + 4 * B * S * S * D,
        transcendentals=B * H * S * S,
        bytes_accessed=4 * B * S * D * itemsize + 4 * D * D * itemsize,
    )

    kernel = functools.partial(mha_kernel, scale=1.0 / math.sqrt(d_k))

    return pl.pallas_call(
        kernel,
        out_shape=jax.ShapeDtypeStruct((B, S, D), q.dtype),
        grid_spec=pltpu.PrefetchScalarGridSpec(
            num_scalar_prefetch=0,
            grid=grid,
            in_specs=[q_spec, kv_spec, kv_spec,
                      w_spec, b_spec, w_spec, b_spec, w_spec, b_spec,
                      wo_spec, bo_spec],
            out_specs=out_spec,
            scratch_shapes=[
                pltpu.VMEM((H, S, d_k), q.dtype),       # per-head K projection cache
                pltpu.VMEM((H, S, d_k), q.dtype),       # per-head V projection cache
                pltpu.VMEM((q_tile, D), jnp.float32),   # output-projection accumulator
            ],
        ),
        compiler_params=pltpu.CompilerParams(
            # q-tile and head axes carry data dependences (KV cache / output accum),
            # so only the batch axis is exposed for megacore sharding.
            dimension_semantics=("parallel", "arbitrary", "arbitrary"),
        ),
        cost_estimate=cost,
    )(q, k, v, wq_h, bq_h, wk_h, bk_h, wv_h, bv_h, wo_h, bo)


def reference_mha(q, k, v, params, *, num_heads):
    """Pure-JAX reference mirroring the PyTorch forward (eval mode, no masks)."""
    B, S, D = q.shape
    d_k = D // num_heads
    hp = jax.lax.Precision.HIGHEST

    Q = jnp.dot(q, params["wq"], precision=hp) + params["bq"]
    K = jnp.dot(k, params["wk"], precision=hp) + params["bk"]
    V = jnp.dot(v, params["wv"], precision=hp) + params["bv"]

    def heads(x):
        return x.reshape(B, S, num_heads, d_k).transpose(0, 2, 1, 3)   # (B, H, S, d_k)

    Qh, Kh, Vh = heads(Q), heads(K), heads(V)
    scores = jnp.einsum("bhqd,bhkd->bhqk", Qh, Kh, precision=hp) / math.sqrt(d_k)
    attn = jax.nn.softmax(scores, axis=-1)
    ctx = jnp.einsum("bhqk,bhkd->bhqd", attn, Vh, precision=hp)
    ctx = ctx.transpose(0, 2, 1, 3).reshape(B, S, D)
    return jnp.dot(ctx, params["wo"], precision=hp) + params["bo"]


if __name__ == "__main__":
    B, S, D, H = 2, 8, 32, 4   # batch, seq, embedding_dim, num_heads (toy shapes)

    key = jax.random.PRNGKey(0)
    keys = jax.random.split(key, 11)

    def init_linear(kw, kb, fan_in, fan_out):
        bound = 1.0 / math.sqrt(fan_in)
        w = jax.random.uniform(kw, (fan_in, fan_out), jnp.float32, -bound, bound)  # pre-transposed
        b = jax.random.uniform(kb, (fan_out,), jnp.float32, -bound, bound)
        return w, b

    wq, bq = init_linear(keys[0], keys[1], D, D)
    wk, bk = init_linear(keys[2], keys[3], D, D)
    wv, bv = init_linear(keys[4], keys[5], D, D)
    wo, bo = init_linear(keys[6], keys[7], D, D)
    params = dict(wq=wq, bq=bq, wk=wk, bk=bk, wv=wv, bv=bv, wo=wo, bo=bo)

    q = jax.random.normal(keys[8], (B, S, D), jnp.float32)
    k = jax.random.normal(keys[9], (B, S, D), jnp.float32)
    v = jax.random.normal(keys[10], (B, S, D), jnp.float32)

    out = multi_headed_attention(q, k, v, params, num_heads=H)
    out = jax.block_until_ready(out)

    ref = reference_mha(q, k, v, params, num_heads=H)
    assert out.shape == (B, S, D)
    # Tolerance covers the approximate EUP reciprocal used for softmax normalization.
    assert jnp.allclose(out, ref, atol=5e-3, rtol=5e-3), "Pallas output mismatch vs reference"

    print("KERNEL_OK")
</pallas_src>

<mosaic_0001>
module attributes {stable_mosaic.version = 11 : i64} {
  func.func @mha_kernel(%arg0: i32, %arg1: i32, %arg2: i32, %arg3: memref<1x8x32xf32, #tpu.memory_space<vmem>>, %arg4: memref<1x8x32xf32, #tpu.memory_space<vmem>>, %arg5: memref<1x8x32xf32, #tpu.memory_space<vmem>>, %arg6: memref<1x32x8xf32, #tpu.memory_space<vmem>>, %arg7: memref<1x1x8xf32, #tpu.memory_space<vmem>>, %arg8: memref<1x32x8xf32, #tpu.memory_space<vmem>>, %arg9: memref<1x1x8xf32, #tpu.memory_space<vmem>>, %arg10: memref<1x32x8xf32, #tpu.memory_space<vmem>>, %arg11: memref<1x1x8xf32, #tpu.memory_space<vmem>>, %arg12: memref<1x8x32xf32, #tpu.memory_space<vmem>>, %arg13: memref<1x32xf32, #tpu.memory_space<vmem>>, %arg14: memref<1x8x32xf32, #tpu.memory_space<vmem>>, %arg15: memref<4x8x8xf32, #tpu.memory_space<vmem>>, %arg16: memref<4x8x8xf32, #tpu.memory_space<vmem>>, %arg17: memref<8x32xf32, #tpu.memory_space<vmem>>) attributes {dimension_semantics = [#tpu.dimension_semantics<parallel>, #tpu.dimension_semantics<arbitrary>, #tpu.dimension_semantics<arbitrary>], iteration_bounds = array<i64: 2, 1, 4>, scalar_prefetch = 0 : i64, scratch_operands = 3 : i64, tpu.core_type = #tpu.core_type<tc>, window_params = [{transform_indices = @transform_0, window_bounds = array<i64: 1, 8, 32>}, {transform_indices = @transform_1, window_bounds = array<i64: 1, 8, 32>}, {transform_indices = @transform_2, window_bounds = array<i64: 1, 8, 32>}, {transform_indices = @transform_3, window_bounds = array<i64: 1, 32, 8>}, {transform_indices = @transform_4, window_bounds = array<i64: 1, 1, 8>}, {transform_indices = @transform_5, window_bounds = array<i64: 1, 32, 8>}, {transform_indices = @transform_6, window_bounds = array<i64: 1, 1, 8>}, {transform_indices = @transform_7, window_bounds = array<i64: 1, 32, 8>}, {transform_indices = @transform_8, window_bounds = array<i64: 1, 1, 8>}, {transform_indices = @transform_9, window_bounds = array<i64: 1, 8, 32>}, {pipeline_mode = #tpu.pipeline_mode<synchronous>, transform_indices = @transform_10, window_bounds = array<i64: 1, 32>}, {transform_indices = @transform_11, window_bounds = array<i64: 1, 8, 32>}]} {
    %c0_i32 = arith.constant 0 : i32
    %0 = arith.cmpi eq, %arg2, %c0_i32 : i32
    %1 = arith.extui %0 : i1 to i32
    %c0_i32_0 = arith.constant 0 : i32
    %2 = arith.cmpi ne, %1, %c0_i32_0 : i32
    scf.if %2 {
      %cst_29 = arith.constant 0.000000e+00 : f32
      %44 = vector.broadcast %cst_29 : f32 to vector<8x32xf32>
      %c0_30 = arith.constant 0 : index
      %c0_31 = arith.constant 0 : index
      %45 = vector.load %arg17[%c0_30, %c0_31] : memref<8x32xf32, #tpu.memory_space<vmem>>, vector<8x32xf32>
      tpu.vector_store %arg17[%c0_30, %c0_31], %44 {strides = array<i32>} : memref<8x32xf32, #tpu.memory_space<vmem>>, vector<8x32xf32>,
    } else {
    }
    %c0 = arith.constant 0 : index
    %c0_1 = arith.constant 0 : index
    %c0_2 = arith.constant 0 : index
    %3 = vector.load %arg3[%c0, %c0_1, %c0_2] : memref<1x8x32xf32, #tpu.memory_space<vmem>>, vector<1x8x32xf32>
    %4 = vector.shape_cast %3 : vector<1x8x32xf32> to vector<8x32xf32>
    %c0_i32_3 = arith.constant 0 : i32
    %5 = arith.cmpi eq, %arg1, %c0_i32_3 : i32
    %6 = arith.extui %5 : i1 to i32
    %c0_i32_4 = arith.constant 0 : i32
    %7 = arith.cmpi ne, %6, %c0_i32_4 : i32
    scf.if %7 {
      %c0_29 = arith.constant 0 : index
      %c0_30 = arith.constant 0 : index
      %c0_31 = arith.constant 0 : index
      %44 = vector.load %arg4[%c0_29, %c0_30, %c0_31] : memref<1x8x32xf32, #tpu.memory_space<vmem>>, vector<1x8x32xf32>
      %45 = vector.shape_cast %44 : vector<1x8x32xf32> to vector<8x32xf32>
      %c0_32 = arith.constant 0 : index
      %c0_33 = arith.constant 0 : index
      %c0_34 = arith.constant 0 : index
      %46 = vector.load %arg5[%c0_32, %c0_33, %c0_34] : memref<1x8x32xf32, #tpu.memory_space<vmem>>, vector<1x8x32xf32>
      %47 = vector.shape_cast %46 : vector<1x8x32xf32> to vector<8x32xf32>
      %c0_35 = arith.constant 0 : index
      %c0_36 = arith.constant 0 : index
      %c0_37 = arith.constant 0 : index
      %48 = vector.load %arg8[%c0_35, %c0_36, %c0_37] : memref<1x32x8xf32, #tpu.memory_space<vmem>>, vector<1x32x8xf32>
      %49 = vector.shape_cast %48 : vector<1x32x8xf32> to vector<32x8xf32>
      %cst_38 = arith.constant dense<0.000000e+00> : vector<8x8xf32>
      %50 = tpu.matmul %45, %49, %cst_38 {dimension_numbers = #tpu.dot_dimension_numbers<[1], [0], [0], [1], [0, 0, 1, 1], [], []>} : vector<8x32xf32>, vector<32x8xf32>, vector<8x8xf32> -> vector<8x8xf32>
      %c0_39 = arith.constant 0 : index
      %c0_40 = arith.constant 0 : index
      %c0_41 = arith.constant 0 : index
      %51 = vector.load %arg9[%c0_39, %c0_40, %c0_41] : memref<1x1x8xf32, #tpu.memory_space<vmem>>, vector<1x1x8xf32>
      %52 = vector.shape_cast %51 : vector<1x1x8xf32> to vector<1x8xf32>
      %53 = vector.broadcast %52 : vector<1x8xf32> to vector<8x8xf32>
      %54 = arith.addf %50, %53 : vector<8x8xf32>
      %c0_42 = arith.constant 0 : index
      %c0_43 = arith.constant 0 : index
      %c0_44 = arith.constant 0 : index
      %55 = vector.load %arg10[%c0_42, %c0_43, %c0_44] : memref<1x32x8xf32, #tpu.memory_space<vmem>>, vector<1x32x8xf32>
      %56 = vector.shape_cast %55 : vector<1x32x8xf32> to vector<32x8xf32>
      %cst_45 = arith.constant dense<0.000000e+00> : vector<8x8xf32>
      %57 = tpu.matmul %47, %56, %cst_45 {dimension_numbers = #tpu.dot_dimension_numbers<[1], [0], [0], [1], [0, 0, 1, 1], [], []>} : vector<8x32xf32>, vector<32x8xf32>, vector<8x8xf32> -> vector<8x8xf32>
      %c0_46 = arith.constant 0 : index
      %c0_47 = arith.constant 0 : index
      %c0_48 = arith.constant 0 : index
      %58 = vector.load %arg11[%c0_46, %c0_47, %c0_48] : memref<1x1x8xf32, #tpu.memory_space<vmem>>, vector<1x1x8xf32>
      %59 = vector.shape_cast %58 : vector<1x1x8xf32> to vector<1x8xf32>
      %60 = vector.broadcast %59 : vector<1x8xf32> to vector<8x8xf32>
      %61 = arith.addf %57, %60 : vector<8x8xf32>
      %62 = arith.index_cast %arg2 : i32 to index
      %c0_49 = arith.constant 0 : index
      %c0_50 = arith.constant 0 : index
      %63 = vector.load %arg15[%62, %c0_49, %c0_50] : memref<4x8x8xf32, #tpu.memory_space<vmem>>, vector<1x8x8xf32>
      %64 = vector.shape_cast %63 : vector<1x8x8xf32> to vector<8x8xf32>
      %65 = vector.shape_cast %54 : vector<8x8xf32> to vector<1x8x8xf32>
      tpu.vector_store %arg15[%62, %c0_49, %c0_50], %65 {strides = array<i32>} : memref<4x8x8xf32, #tpu.memory_space<vmem>>, vector<1x8x8xf32>,
      %66 = arith.index_cast %arg2 : i32 to index
      %c0_51 = arith.constant 0 : index
      %c0_52 = arith.constant 0 : index
      %67 = vector.load %arg16[%66, %c0_51, %c0_52] : memref<4x8x8xf32, #tpu.memory_space<vmem>>, vector<1x8x8xf32>
      %68 = vector.shape_cast %67 : vector<1x8x8xf32> to vector<8x8xf32>
      %69 = vector.shape_cast %61 : vector<8x8xf32> to vector<1x8x8xf32>
      tpu.vector_store %arg16[%66, %c0_51, %c0_52], %69 {strides = array<i32>} : memref<4x8x8xf32, #tpu.memory_space<vmem>>, vector<1x8x8xf32>,
    } else {
    }
    %8 = arith.index_cast %arg2 : i32 to index
    %c0_5 = arith.constant 0 : index
    %c0_6 = arith.constant 0 : index
    %9 = vector.load %arg15[%8, %c0_5, %c0_6] : memref<4x8x8xf32, #tpu.memory_space<vmem>>, vector<1x8x8xf32>
    %10 = vector.shape_cast %9 : vector<1x8x8xf32> to vector<8x8xf32>
    %11 = arith.index_cast %arg2 : i32 to index
    %c0_7 = arith.constant 0 : index
    %c0_8 = arith.constant 0 : index
    %12 = vector.load %arg16[%11, %c0_7, %c0_8] : memref<4x8x8xf32, #tpu.memory_space<vmem>>, vector<1x8x8xf32>
    %13 = vector.shape_cast %12 : vector<1x8x8xf32> to vector<8x8xf32>
    %c0_9 = arith.constant 0 : index
    %c0_10 = arith.constant 0 : index
    %c0_11 = arith.constant 0 : index
    %14 = vector.load %arg6[%c0_9, %c0_10, %c0_11] : memref<1x32x8xf32, #tpu.memory_space<vmem>>, vector<1x32x8xf32>
    %15 = vector.shape_cast %14 : vector<1x32x8xf32> to vector<32x8xf32>
    %cst = arith.constant dense<0.000000e+00> : vector<8x8xf32>
    %16 = tpu.matmul %4, %15, %cst {dimension_numbers = #tpu.dot_dimension_numbers<[1], [0], [0], [1], [0, 0, 1, 1], [], []>} : vector<8x32xf32>, vector<32x8xf32>, vector<8x8xf32> -> vector<8x8xf32>
    %c0_12 = arith.constant 0 : index
    %c0_13 = arith.constant 0 : index
    %c0_14 = arith.constant 0 : index
    %17 = vector.load %arg7[%c0_12, %c0_13, %c0_14] : memref<1x1x8xf32, #tpu.memory_space<vmem>>, vector<1x1x8xf32>
    %18 = vector.shape_cast %17 : vector<1x1x8xf32> to vector<1x8xf32>
    %19 = vector.broadcast %18 : vector<1x8xf32> to vector<8x8xf32>
    %20 = arith.addf %16, %19 : vector<8x8xf32>
    %cst_15 = arith.constant 0.353553385 : f32
    %21 = vector.broadcast %cst_15 : f32 to vector<8x8xf32>
    %22 = arith.mulf %20, %21 : vector<8x8xf32>
    "tpu.trace_start"() <{level = 10 : i32, message = "qd,kd->qk"}> : () -> ()
    %cst_16 = arith.constant dense<0.000000e+00> : vector<8x8xf32>
    %23 = tpu.matmul %22, %10, %cst_16 {dimension_numbers = #tpu.dot_dimension_numbers<[1], [1], [0], [0], [0, 0, 1, 0], [], []>} : vector<8x8xf32>, vector<8x8xf32>, vector<8x8xf32> -> vector<8x8xf32>
    "tpu.trace_stop"() : () -> ()
    %cst_17 = arith.constant dense<0xFF800000> : vector<8xf32>
    %24 = vector.multi_reduction <maximumf>, %23, %cst_17 [1] : vector<8x8xf32> to vector<8xf32>
    %25 = vector.shape_cast %24 : vector<8xf32> to vector<8x1xf32>
    %26 = vector.broadcast %25 : vector<8x1xf32> to vector<8x8xf32>
    %27 = arith.subf %23, %26 : vector<8x8xf32>
    %28 = math.exp %27 : vector<8x8xf32>
    %cst_18 = arith.constant dense<0.000000e+00> : vector<8xf32>
    %29 = vector.multi_reduction <add>, %28, %cst_18 [1] : vector<8x8xf32> to vector<8xf32>
    %30 = vector.shape_cast %29 : vector<8xf32> to vector<8x1xf32>
    %cst_19 = arith.constant dense<0.000000e+00> : vector<8x8xf32>
    %31 = tpu.matmul %28, %13, %cst_19 {dimension_numbers = #tpu.dot_dimension_numbers<[1], [0], [0], [1], [0, 0, 1, 1], [], []>} : vector<8x8xf32>, vector<8x8xf32>, vector<8x8xf32> -> vector<8x8xf32>
    %32 = tpu.reciprocal %30 {approx = true} : vector<8x1xf32> -> vector<8x1xf32>
    %33 = vector.broadcast %32 : vector<8x1xf32> to vector<8x8xf32>
    %34 = arith.mulf %31, %33 : vector<8x8xf32>
    %c0_20 = arith.constant 0 : index
    %c0_21 = arith.constant 0 : index
    %35 = vector.load %arg17[%c0_20, %c0_21] : memref<8x32xf32, #tpu.memory_space<vmem>>, vector<8x32xf32>
    %c0_22 = arith.constant 0 : index
    %c0_23 = arith.constant 0 : index
    %c0_24 = arith.constant 0 : index
    %36 = vector.load %arg12[%c0_22, %c0_23, %c0_24] : memref<1x8x32xf32, #tpu.memory_space<vmem>>, vector<1x8x32xf32>
    %37 = vector.shape_cast %36 : vector<1x8x32xf32> to vector<8x32xf32>
    %cst_25 = arith.constant dense<0.000000e+00> : vector<8x32xf32>
    %38 = tpu.matmul %34, %37, %cst_25 {dimension_numbers = #tpu.dot_dimension_numbers<[1], [0], [0], [1], [0, 0, 1, 1], [], []>} : vector<8x8xf32>, vector<8x32xf32>, vector<8x32xf32> -> vector<8x32xf32>
    %39 = arith.addf %35, %38 : vector<8x32xf32>
    %c0_26 = arith.constant 0 : index
    %c0_27 = arith.constant 0 : index
    %40 = vector.load %arg17[%c0_26, %c0_27] : memref<8x32xf32, #tpu.memory_space<vmem>>, vector<8x32xf32>
    tpu.vector_store %arg17[%c0_26, %c0_27], %39 {strides = array<i32>} : memref<8x32xf32, #tpu.memory_space<vmem>>, vector<8x32xf32>,
    %c3_i32 = arith.constant 3 : i32
    %41 = arith.cmpi eq, %arg2, %c3_i32 : i32
    %42 = arith.extui %41 : i1 to i32
    %c0_i32_28 = arith.constant 0 : i32
    %43 = arith.cmpi ne, %42, %c0_i32_28 : i32
    scf.if %43 {
      %c0_29 = arith.constant 0 : index
      %c0_30 = arith.constant 0 : index
      %44 = vector.load %arg17[%c0_29, %c0_30] : memref<8x32xf32, #tpu.memory_space<vmem>>, vector<8x32xf32>
      %c0_31 = arith.constant 0 : index
      %c0_32 = arith.constant 0 : index
      %45 = vector.load %arg13[%c0_31, %c0_32] : memref<1x32xf32, #tpu.memory_space<vmem>>, vector<1x32xf32>
      %46 = vector.broadcast %45 : vector<1x32xf32> to vector<8x32xf32>
      %47 = arith.addf %44, %46 : vector<8x32xf32>
      %c0_33 = arith.constant 0 : index
      %c0_34 = arith.constant 0 : index
      %c0_35 = arith.constant 0 : index
      %48 = vector.load %arg14[%c0_33, %c0_34, %c0_35] : memref<1x8x32xf32, #tpu.memory_space<vmem>>, vector<1x8x32xf32>
      %49 = vector.shape_cast %48 : vector<1x8x32xf32> to vector<8x32xf32>
      %50 = vector.shape_cast %47 : vector<8x32xf32> to vector<1x8x32xf32>
      tpu.vector_store %arg14[%c0_33, %c0_34, %c0_35], %50 {strides = array<i32>} : memref<1x8x32xf32, #tpu.memory_space<vmem>>, vector<1x8x32xf32>,
    } else {
    }
    return
  }
  func.func @transform_0(%arg0: i32, %arg1: i32, %arg2: i32) -> (i32, i32, i32) {
    %c0_i32 = arith.constant 0 : i32
    %c0_i32_0 = arith.constant 0 : i32
    return %arg0, %arg1, %c0_i32 : i32, i32, i32
  }
  func.func @transform_1(%arg0: i32, %arg1: i32, %arg2: i32) -> (i32, i32, i32) {
    %c0_i32 = arith.constant 0 : i32
    %c0_i32_0 = arith.constant 0 : i32
    %c0_i32_1 = arith.constant 0 : i32
    return %arg0, %c0_i32, %c0_i32_0 : i32, i32, i32
  }
  func.func @transform_2(%arg0: i32, %arg1: i32, %arg2: i32) -> (i32, i32, i32) {
    %c0_i32 = arith.constant 0 : i32
    %c0_i32_0 = arith.constant 0 : i32
    %c0_i32_1 = arith.constant 0 : i32
    return %arg0, %c0_i32, %c0_i32_0 : i32, i32, i32
  }
  func.func @transform_3(%arg0: i32, %arg1: i32, %arg2: i32) -> (i32, i32, i32) {
    %c0_i32 = arith.constant 0 : i32
    %c0_i32_0 = arith.constant 0 : i32
    %c0_i32_1 = arith.constant 0 : i32
    return %arg2, %c0_i32, %c0_i32_0 : i32, i32, i32
  }
  func.func @transform_4(%arg0: i32, %arg1: i32, %arg2: i32) -> (i32, i32, i32) {
    %c0_i32 = arith.constant 0 : i32
    %c0_i32_0 = arith.constant 0 : i32
    %c0_i32_1 = arith.constant 0 : i32
    return %arg2, %c0_i32, %c0_i32_0 : i32, i32, i32
  }
  func.func @transform_5(%arg0: i32, %arg1: i32, %arg2: i32) -> (i32, i32, i32) {
    %c0_i32 = arith.constant 0 : i32
    %c0_i32_0 = arith.constant 0 : i32
    %c0_i32_1 = arith.constant 0 : i32
    return %arg2, %c0_i32, %c0_i32_0 : i32, i32, i32
  }
  func.func @transform_6(%arg0: i32, %arg1: i32, %arg2: i32) -> (i32, i32, i32) {
    %c0_i32 = arith.constant 0 : i32
    %c0_i32_0 = arith.constant 0 : i32
    %c0_i32_1 = arith.constant 0 : i32
    return %arg2, %c0_i32, %c0_i32_0 : i32, i32, i32
  }
  func.func @transform_7(%arg0: i32, %arg1: i32, %arg2: i32) -> (i32, i32, i32) {
    %c0_i32 = arith.constant 0 : i32
    %c0_i32_0 = arith.constant 0 : i32
    %c0_i32_1 = arith.constant 0 : i32
    return %arg2, %c0_i32, %c0_i32_0 : i32, i32, i32
  }
  func.func @transform_8(%arg0: i32, %arg1: i32, %arg2: i32) -> (i32, i32, i32) {
    %c0_i32 = arith.constant 0 : i32
    %c0_i32_0 = arith.constant 0 : i32
    %c0_i32_1 = arith.constant 0 : i32
    return %arg2, %c0_i32, %c0_i32_0 : i32, i32, i32
  }
  func.func @transform_9(%arg0: i32, %arg1: i32, %arg2: i32) -> (i32, i32, i32) {
    %c0_i32 = arith.constant 0 : i32
    %c0_i32_0 = arith.constant 0 : i32
    %c0_i32_1 = arith.constant 0 : i32
    return %arg2, %c0_i32, %c0_i32_0 : i32, i32, i32
  }
  func.func @transform_10(%arg0: i32, %arg1: i32, %arg2: i32) -> (i32, i32) {
    %c0_i32 = arith.constant 0 : i32
    %c0_i32_0 = arith.constant 0 : i32
    %c0_i32_1 = arith.constant 0 : i32
    return %c0_i32, %c0_i32_0 : i32, i32
  }
  func.func @transform_11(%arg0: i32, %arg1: i32, %arg2: i32) -> (i32, i32, i32) {
    %c0_i32 = arith.constant 0 : i32
    %c0_i32_0 = arith.constant 0 : i32
    return %arg0, %arg1, %c0_i32 : i32, i32, i32
  }
}

</mosaic_0001>

<llo_original>
// kernel: tpu_custom_call.1
$region0: #{tpu_custom_call.1}
  #allocation0 [shape = 'u32[]', space=smem, size = 0x4, offset = 0x4, fixed_abs, tag = 'smem constant byte address 0x4 - core index']
  #allocation1 [shape = 'u32[72,128]{1,0:T(1,128)}', space=vmem, size = 0x9000, scoped, tag = 'internal scratch']
  #allocation2 [shape = 'f32[4,8,8]{2,1,0:T(8,128)}', space=vmem, size = 0x4000, scoped, tag = 'scratch operand']
  #allocation3 [shape = 'f32[4,8,8]{2,1,0:T(8,128)}', space=vmem, size = 0x4000, scoped, tag = 'scratch operand']
  #allocation4 [shape = 'f32[8,32]{1,0:T(8,128)}', space=vmem, size = 0x1000, scoped, tag = 'scratch operand']
  %s0 = inlined_call_operand.vmem [shape: f32[2,8,32], index: 0, kind: input, shape index: {}]
  %s1 = inlined_call_operand.vmem [shape: f32[2,8,32], index: 1, kind: input, shape index: {}]
  %s2 = inlined_call_operand.vmem [shape: f32[2,8,32], index: 2, kind: input, shape index: {}]
  %s3 = inlined_call_operand.vmem [shape: f32[4,32,8], index: 3, kind: input, shape index: {}]
  %s4 = inlined_call_operand.vmem [shape: f32[4,1,8], index: 4, kind: input, shape index: {}]
  %s5 = inlined_call_operand.vmem [shape: f32[4,32,8], index: 5, kind: input, shape index: {}]
  %s6 = inlined_call_operand.vmem [shape: f32[4,1,8], index: 6, kind: input, shape index: {}]
  %s7 = inlined_call_operand.vmem [shape: f32[4,32,8], index: 7, kind: input, shape index: {}]
  %s8 = inlined_call_operand.vmem [shape: f32[4,1,8], index: 8, kind: input, shape index: {}]
  %s9 = inlined_call_operand.vmem [shape: f32[4,8,32], index: 9, kind: input, shape index: {}]
  %s10 = inlined_call_operand.vmem [shape: f32[1,32], index: 10, kind: input, shape index: {}]
  %s11 = inlined_call_operand.hbm [shape: f32[2,8,32], index: 11, kind: output, shape index: {}]
  %s12 = sld [smem:[#allocation0]]
  $region89: #{tpu_custom_call.1} parent=0
    _
  %s14 = ssub.s32 1, %s12
  %s15 = scalar_select 0, %s14, %s12
  $region1: #{tpu_custom_call.1} parent=0
    #allocation5 [shape = 'u8[8192]{0}', space=vmem, size = 0x2000, scoped, tag = 'output window, operand 0']
    #allocation6 [shape = 's32[2]{0}', space=sflag, size = 0x8, scoped, tag = 'scoped memory for tpu_custom_call.1']
    %16 = vsyncpa [#allocation6], 0
    %s17 = scalar_lea.sflag [#allocation6], 1
    %18 = vsyncpa %s17, 0
    loop: start=0, step=1, limit=10
    $region2: #{tpu_custom_call.1} parent=1 // loop_pre_header
      _
    $region3: #{tpu_custom_call.1} parent=1 // loop_header
      %s20 = sphi 0, %s24
      %p21 = scmp.ge.s32.totalorder %s20, 10
      %s27 = sphi 0, %s46
      %s28 = sphi 0, %s42
      %s29 = sphi 0, %s38
      %s30 = sphi 0, %s27
      %s31 = sphi 0, %s28
      %s32 = sphi 0, %s29
      %s33 = sphi 0, %s30
      %s34 = sphi 0, %s31
      %s35 = sphi 0, %s32
      %s51 = sphi 0, %s53
      %s54 = sphi 0, %s51
      %s55 = sphi 0, %s54
      %s71 = sphi 0, %s55
      %s77 = sphi 0, %s79
      %s80 = sphi 0, %s77
      %s81 = sphi 0, %s80
      %s97 = sphi 0, %s81
      %s103 = sphi 0, %s105
      %s106 = sphi 0, %s103
      %s107 = sphi 0, %s106
      %s123 = sphi 0, %s107
      %s129 = sphi 0, %s131
      %s132 = sphi 0, %s129
      %s133 = sphi 0, %s132
      %s149 = sphi 0, %s133
      %s155 = sphi 0, %s157
      %s158 = sphi 0, %s155
      %s159 = sphi 0, %s158
      %s175 = sphi 0, %s159
      %s181 = sphi 0, %s183
      %s184 = sphi 0, %s181
      %s185 = sphi 0, %s184
      %s201 = sphi 0, %s185
      %s207 = sphi 0, %s209
      %s210 = sphi 0, %s207
      %s211 = sphi 0, %s210
      %s227 = sphi 0, %s211
      %s233 = sphi 0, %s235
      %s236 = sphi 0, %s233
      %s237 = sphi 0, %s236
      %s253 = sphi 0, %s237
      %s259 = sphi 0, %s261
      %s262 = sphi 0, %s259
      %s263 = sphi 0, %s262
      %s279 = sphi 0, %s263
      %s285 = sphi 0, %s287
      %s288 = sphi 0, %s285
      %s289 = sphi 0, %s288
      %s305 = sphi 0, %s289
      %s309 = sphi 0, %s309
      %s311 = sphi 0, %s309
      %s312 = sphi 0, %s311
      %s326 = sphi 0, %s312
      %s334 = sphi 0, %s336
      %s337 = sphi 0, %s334
      %s338 = sphi 0, %s337
      %s354 = sphi 0, %s338
    $region4: #{tpu_custom_call.1} parent=1 // loop_header_branch
      %23 = sbr.rel (%p21) target = $region8
    $region5: #{tpu_custom_call.1} parent=1 // loop_body
      %s25 = ssub.s32 %s20, 1
      %s26 = ssub.s32 %s20, 2
      %s36 = sadd.s32 1, %s29
      %p37 = scmp.ge.s32.totalorder %s36, 4
      %s38 = scalar_select %p37, 0, %s36
      %s39 = sadd.s32 1, %s28
      %s40 = scalar_select %p37, %s39, %s28
      %p41 = scmp.ge.s32.totalorder %s40, 1
      %s42 = scalar_select %p41, 0, %s40
      %s43 = sadd.s32 1, %s27
      %s44 = scalar_select %p41, %s43, %s27
      %p45 = scmp.ge.s32.totalorder %s44, 2
      %s46 = scalar_select %p45, 0, %s44
      %s47 = ssub.s32 %s27, %s46
      %s48 = ssub.s32 %s28, %s42
      %s49 = sor.u32 %s47, %s48
      %p50 = scmp.eq.s32.totalorder %s49, 0
      %s52 = sadd.s32 %s51, 1
      %s53 = scalar_select %p50, %s51, %s52
      %p56 = pneg %p50
      %p57 = scmp.eq.s32.totalorder %s20, 7
      %p58 = por %p56, %p57
      %p59 = scmp.ne.s32.totalorder %s51, %s54
      %p60 = scmp.eq.s32.totalorder %s20, 0
      %p61 = por %p59, %p60
      %p62 = scmp.ne.s32.totalorder %s51, %s54
      %p63 = scmp.eq.s32.totalorder %s25, 7
      %p64 = por %p62, %p63
      %p65 = scmp.ne.s32.totalorder %s54, %s55
      %p66 = scmp.eq.s32.totalorder %s25, 0
      %p67 = por %p65, %p66
      %p68 = scmp.ne.s32.totalorder %s54, %s55
      %p69 = scmp.eq.s32.totalorder %s26, 7
      %p70 = por %p68, %p69
      %p72 = scmp.ne.s32.totalorder %s55, %s71
      %p73 = scmp.eq.s32.totalorder %s26, 0
      %p74 = por %p72, %p73
      %s75 = ssub.s32 %s27, %s46
      %p76 = scmp.eq.s32.totalorder %s75, 0
      %s78 = sadd.s32 %s77, 1
      %s79 = scalar_select %p76, %s77, %s78
      %p82 = pneg %p76
      %p83 = scmp.eq.s32.totalorder %s20, 7
      %p84 = por %p82, %p83
      %p85 = scmp.ne.s32.totalorder %s77, %s80
      %p86 = scmp.eq.s32.totalorder %s20, 0
      %p87 = por %p85, %p86
      %p88 = scmp.ne.s32.totalorder %s77, %s80
      %p89 = scmp.eq.s32.totalorder %s25, 7
      %p90 = por %p88, %p89
      %p91 = scmp.ne.s32.totalorder %s80, %s81
      %p92 = scmp.eq.s32.totalorder %s25, 0
      %p93 = por %p91, %p92
      %p94 = scmp.ne.s32.totalorder %s80, %s81
      %p95 = scmp.eq.s32.totalorder %s26, 7
      %p96 = por %p94, %p95
      %p98 = scmp.ne.s32.totalorder %s81, %s97
      %p99 = scmp.eq.s32.totalorder %s26, 0
      %p100 = por %p98, %p99
      %s101 = ssub.s32 %s27, %s46
      %p102 = scmp.eq.s32.totalorder %s101, 0
      %s104 = sadd.s32 %s103, 1
      %s105 = scalar_select %p102, %s103, %s104
      %p108 = pneg %p102
      %p109 = scmp.eq.s32.totalorder %s20, 7
      %p110 = por %p108, %p109
      %p111 = scmp.ne.s32.totalorder %s103, %s106
      %p112 = scmp.eq.s32.totalorder %s20, 0
      %p113 = por %p111, %p112
      %p114 = scmp.ne.s32.totalorder %s103, %s106
      %p115 = scmp.eq.s32.totalorder %s25, 7
      %p116 = por %p114, %p115
      %p117 = scmp.ne.s32.totalorder %s106, %s107
      %p118 = scmp.eq.s32.totalorder %s25, 0
      %p119 = por %p117, %p118
      %p120 = scmp.ne.s32.totalorder %s106, %s107
      %p121 = scmp.eq.s32.totalorder %s26, 7
      %p122 = por %p120, %p121
      %p124 = scmp.ne.s32.totalorder %s107, %s123
      %p125 = scmp.eq.s32.totalorder %s26, 0
      %p126 = por %p124, %p125
      %s127 = ssub.s32 %s29, %s38
      %p128 = scmp.eq.s32.totalorder %s127, 0
      %s130 = sadd.s32 %s129, 1
      %s131 = scalar_select %p128, %s129, %s130
      %p134 = pneg %p128
      %p135 = scmp.eq.s32.totalorder %s20, 7
      %p136 = por %p134, %p135
      %p137 = scmp.ne.s32.totalorder %s129, %s132
      %p138 = scmp.eq.s32.totalorder %s20, 0
      %p139 = por %p137, %p138
      %p140 = scmp.ne.s32.totalorder %s129, %s132
      %p141 = scmp.eq.s32.totalorder %s25, 7
      %p142 = por %p140, %p141
      %p143 = scmp.ne.s32.totalorder %s132, %s133
      %p144 = scmp.eq.s32.totalorder %s25, 0
      %p145 = por %p143, %p144
      %p146 = scmp.ne.s32.totalorder %s132, %s133
      %p147 = scmp.eq.s32.totalorder %s26, 7
      %p148 = por %p146, %p147
      %p150 = scmp.ne.s32.totalorder %s133, %s149
      %p151 = scmp.eq.s32.totalorder %s26, 0
      %p152 = por %p150, %p151
      %s153 = ssub.s32 %s29, %s38
      %p154 = scmp.eq.s32.totalorder %s153, 0
      %s156 = sadd.s32 %s155, 1
      %s157 = scalar_select %p154, %s155, %s156
      %p160 = pneg %p154
      %p161 = scmp.eq.s32.totalorder %s20, 7
      %p162 = por %p160, %p161
      %p163 = scmp.ne.s32.totalorder %s155, %s158
      %p164 = scmp.eq.s32.totalorder %s20, 0
      %p165 = por %p163, %p164
      %p166 = scmp.ne.s32.totalorder %s155, %s158
      %p167 = scmp.eq.s32.totalorder %s25, 7
      %p168 = por %p166, %p167
      %p169 = scmp.ne.s32.totalorder %s158, %s159
      %p170 = scmp.eq.s32.totalorder %s25, 0
      %p171 = por %p169, %p170
      %p172 = scmp.ne.s32.totalorder %s158, %s159
      %p173 = scmp.eq.s32.totalorder %s26, 7
      %p174 = por %p172, %p173
      %p176 = scmp.ne.s32.totalorder %s159, %s175
      %p177 = scmp.eq.s32.totalorder %s26, 0
      %p178 = por %p176, %p177
      %s179 = ssub.s32 %s29, %s38
      %p180 = scmp.eq.s32.totalorder %s179, 0
      %s182 = sadd.s32 %s181, 1
      %s183 = scalar_select %p180, %s181, %s182
      %p186 = pneg %p180
      %p187 = scmp.eq.s32.totalorder %s20, 7
      %p188 = por %p186, %p187
      %p189 = scmp.ne.s32.totalorder %s181, %s184
      %p190 = scmp.eq.s32.totalorder %s20, 0
      %p191 = por %p189, %p190
      %p192 = scmp.ne.s32.totalorder %s181, %s184
      %p193 = scmp.eq.s32.totalorder %s25, 7
      %p194 = por %p192, %p193
      %p195 = scmp.ne.s32.totalorder %s184, %s185
      %p196 = scmp.eq.s32.totalorder %s25, 0
      %p197 = por %p195, %p196
      %p198 = scmp.ne.s32.totalorder %s184, %s185
      %p199 = scmp.eq.s32.totalorder %s26, 7
      %p200 = por %p198, %p199
      %p202 = scmp.ne.s32.totalorder %s185, %s201
      %p203 = scmp.eq.s32.totalorder %s26, 0
      %p204 = por %p202, %p203
      %s205 = ssub.s32 %s29, %s38
      %p206 = scmp.eq.s32.totalorder %s205, 0
      %s208 = sadd.s32 %s207, 1
      %s209 = scalar_select %p206, %s207, %s208
      %p212 = pneg %p206
      %p213 = scmp.eq.s32.totalorder %s20, 7
      %p214 = por %p212, %p213
      %p215 = scmp.ne.s32.totalorder %s207, %s210
      %p216 = scmp.eq.s32.totalorder %s20, 0
      %p217 = por %p215, %p216
      %p218 = scmp.ne.s32.totalorder %s207, %s210
      %p219 = scmp.eq.s32.totalorder %s25, 7
      %p220 = por %p218, %p219
      %p221 = scmp.ne.s32.totalorder %s210, %s211
      %p222 = scmp.eq.s32.totalorder %s25, 0
      %p223 = por %p221, %p222
      %p224 = scmp.ne.s32.totalorder %s210, %s211
      %p225 = scmp.eq.s32.totalorder %s26, 7
      %p226 = por %p224, %p225
      %p228 = scmp.ne.s32.totalorder %s211, %s227
      %p229 = scmp.eq.s32.totalorder %s26, 0
      %p230 = por %p228, %p229
      %s231 = ssub.s32 %s29, %s38
      %p232 = scmp.eq.s32.totalorder %s231, 0
      %s234 = sadd.s32 %s233, 1
      %s235 = scalar_select %p232, %s233, %s234
      %p238 = pneg %p232
      %p239 = scmp.eq.s32.totalorder %s20, 7
      %p240 = por %p238, %p239
      %p241 = scmp.ne.s32.totalorder %s233, %s236
      %p242 = scmp.eq.s32.totalorder %s20, 0
      %p243 = por %p241, %p242
      %p244 = scmp.ne.s32.totalorder %s233, %s236
      %p245 = scmp.eq.s32.totalorder %s25, 7
      %p246 = por %p244, %p245
      %p247 = scmp.ne.s32.totalorder %s236, %s237
      %p248 = scmp.eq.s32.totalorder %s25, 0
      %p249 = por %p247, %p248
      %p250 = scmp.ne.s32.totalorder %s236, %s237
      %p251 = scmp.eq.s32.totalorder %s26, 7
      %p252 = por %p250, %p251
      %p254 = scmp.ne.s32.totalorder %s237, %s253
      %p255 = scmp.eq.s32.totalorder %s26, 0
      %p256 = por %p254, %p255
      %s257 = ssub.s32 %s29, %s38
      %p258 = scmp.eq.s32.totalorder %s257, 0
      %s260 = sadd.s32 %s259, 1
      %s261 = scalar_select %p258, %s259, %s260
      %p264 = pneg %p258
      %p265 = scmp.eq.s32.totalorder %s20, 7
      %p266 = por %p264, %p265
      %p267 = scmp.ne.s32.totalorder %s259, %s262
      %p268 = scmp.eq.s32.totalorder %s20, 0
      %p269 = por %p267, %p268
      %p270 = scmp.ne.s32.totalorder %s259, %s262
      %p271 = scmp.eq.s32.totalorder %s25, 7
      %p272 = por %p270, %p271
      %p273 = scmp.ne.s32.totalorder %s262, %s263
      %p274 = scmp.eq.s32.totalorder %s25, 0
      %p275 = por %p273, %p274
      %p276 = scmp.ne.s32.totalorder %s262, %s263
      %p277 = scmp.eq.s32.totalorder %s26, 7
      %p278 = por %p276, %p277
      %p280 = scmp.ne.s32.totalorder %s263, %s279
      %p281 = scmp.eq.s32.totalorder %s26, 0
      %p282 = por %p280, %p281
      %s283 = ssub.s32 %s29, %s38
      %p284 = scmp.eq.s32.totalorder %s283, 0
      %s286 = sadd.s32 %s285, 1
      %s287 = scalar_select %p284, %s285, %s286
      %p290 = pneg %p284
      %p291 = scmp.eq.s32.totalorder %s20, 7
      %p292 = por %p290, %p291
      %p293 = scmp.ne.s32.totalorder %s285, %s288
      %p294 = scmp.eq.s32.totalorder %s20, 0
      %p295 = por %p293, %p294
      %p296 = scmp.ne.s32.totalorder %s285, %s288
      %p297 = scmp.eq.s32.totalorder %s25, 7
      %p298 = por %p296, %p297
      %p299 = scmp.ne.s32.totalorder %s288, %s289
      %p300 = scmp.eq.s32.totalorder %s25, 0
      %p301 = por %p299, %p300
      %p302 = scmp.ne.s32.totalorder %s288, %s289
      %p303 = scmp.eq.s32.totalorder %s26, 7
      %p304 = por %p302, %p303
      %p306 = scmp.ne.s32.totalorder %s289, %s305
      %p307 = scmp.eq.s32.totalorder %s26, 0
      %p308 = por %p306, %p307
      %s310 = sadd.s32 %s309, 1
      %p313 = scmp.eq.s32.totalorder %s20, 7
      %p314 = scmp.ne.s32.totalorder %s309, %s311
      %p315 = scmp.eq.s32.totalorder %s20, 0
      %p316 = por %p314, %p315
      %p317 = scmp.ne.s32.totalorder %s309, %s311
      %p318 = scmp.eq.s32.totalorder %s25, 7
      %p319 = por %p317, %p318
      %p320 = scmp.ne.s32.totalorder %s311, %s312
      %p321 = scmp.eq.s32.totalorder %s25, 0
      %p322 = por %p320, %p321
      %p323 = scmp.ne.s32.totalorder %s311, %s312
      %p324 = scmp.eq.s32.totalorder %s26, 7
      %p325 = por %p323, %p324
      %p327 = scmp.ne.s32.totalorder %s312, %s326
      %p328 = scmp.eq.s32.totalorder %s26, 0
      %p329 = por %p327, %p328
      %s330 = ssub.s32 %s27, %s46
      %s331 = ssub.s32 %s28, %s42
      %s332 = sor.u32 %s330, %s331
      %p333 = scmp.eq.s32.totalorder %s332, 0
      %s335 = sadd.s32 %s334, 1
      %s336 = scalar_select %p333, %s334, %s335
      %p339 = pneg %p333
      %p340 = scmp.eq.s32.totalorder %s20, 7
      %p341 = por %p339, %p340
      %p342 = scmp.ne.s32.totalorder %s334, %s337
      %p343 = scmp.eq.s32.totalorder %s20, 0
      %p344 = por %p342, %p343
      %p345 = scmp.ne.s32.totalorder %s334, %s337
      %p346 = scmp.eq.s32.totalorder %s25, 7
      %p347 = por %p345, %p346
      %p348 = scmp.ne.s32.totalorder %s337, %s338
      %p349 = scmp.eq.s32.totalorder %s25, 0
      %p350 = por %p348, %p349
      %p351 = scmp.ne.s32.totalorder %s337, %s338
      %p352 = scmp.eq.s32.totalorder %s26, 7
      %p353 = por %p351, %p352
      %p355 = scmp.ne.s32.totalorder %s338, %s354
      %p356 = scmp.eq.s32.totalorder %s26, 0
      %p357 = por %p355, %p356
      %p358 = scmp.le.s32.totalorder 1, %s20
      %p359 = scmp.lt.s32.totalorder %s20, 9
      %p360 = pnand %p358, %p359
      %p361 = pneg %p360
      // Predicated region
      $region9: #{tpu_custom_call.1} parent=5 // pred_check
        _
      $region10: #{tpu_custom_call.1} parent=5 // pred_check_branch
        %363 = sbr.rel (%p360) target = $region12
      $region11: #{tpu_custom_call.1} parent=5 // pred_region
        %s364 = ssub.s32 %s20, 1
        // Predicated region
        $region13: #{tpu_custom_call.1} parent=11 // pred_check
          %p365 = pneg %p322
        $region14: #{tpu_custom_call.1} parent=11 // pred_check_branch
          %367 = sbr.rel (%p365) target = $region16
        $region15: #{tpu_custom_call.1} parent=11 // pred_region
          _
        $region16: #{tpu_custom_call.1} parent=11 // pred_fallthru
          _
      $region12: #{tpu_custom_call.1} parent=5 // pred_fallthru
        _
      %p368 = scmp.lt.s32.totalorder %s20, 8
      // Predicated region
      $region17: #{tpu_custom_call.1} parent=5 // pred_check
        %p369 = pneg %p368
      $region18: #{tpu_custom_call.1} parent=5 // pred_check_branch
        %371 = sbr.rel (%p369) target = $region20
      $region19: #{tpu_custom_call.1} parent=5 // pred_region
        // Predicated region
        $region21: #{tpu_custom_call.1} parent=19 // pred_check
          %p372 = pneg %p61
        $region22: #{tpu_custom_call.1} parent=19 // pred_check_branch
          %374 = sbr.rel (%p372) target = $region24
        $region23: #{tpu_custom_call.1} parent=19 // pred_region
          %p375 = scmp.lt.s32.totalorder %s27, 1
          %s376 = scalar_select %p375, %s27, 1
          %p377 = scmp.lt.s32.totalorder %s28, 0
          %s378 = scalar_select %p377, %s28, 0
          %s379 = sadd.s32 %s378, %s376
          %s380 = smul.addr %s379, 8
          %s381 = scalar_lea.vmem %s0, %s380
        $region24: #{tpu_custom_call.1} parent=19 // pred_fallthru
          _
        // Predicated region
        $region25: #{tpu_custom_call.1} parent=19 // pred_check
          %p382 = pneg %p87
        $region26: #{tpu_custom_call.1} parent=19 // pred_check_branch
          %384 = sbr.rel (%p382) target = $region28
        $region27: #{tpu_custom_call.1} parent=19 // pred_region
          %p385 = scmp.lt.s32.totalorder %s27, 1
          %s386 = scalar_select %p385, %s27, 1
          %s387 = smul.addr %s386, 8
          %s388 = scalar_lea.vmem %s1, %s387
        $region28: #{tpu_custom_call.1} parent=19 // pred_fallthru
          _
        // Predicated region
        $region29: #{tpu_custom_call.1} parent=19 // pred_check
          %p389 = pneg %p113
        $region30: #{tpu_custom_call.1} parent=19 // pred_check_branch
          %391 = sbr.rel (%p389) target = $region32
        $region31: #{tpu_custom_call.1} parent=19 // pred_region
          %p392 = scmp.lt.s32.totalorder %s27, 1
          %s393 = scalar_select %p392, %s27, 1
          %s394 = smul.addr %s393, 8
          %s395 = scalar_lea.vmem %s2, %s394
        $region32: #{tpu_custom_call.1} parent=19 // pred_fallthru
          _
        // Predicated region
        $region33: #{tpu_custom_call.1} parent=19 // pred_check
          %p396 = pneg %p139
        $region34: #{tpu_custom_call.1} parent=19 // pred_check_branch
          %398 = sbr.rel (%p396) target = $region36
        $region35: #{tpu_custom_call.1} parent=19 // pred_region
          %p399 = scmp.lt.s32.totalorder %s29, 3
          %s400 = scalar_select %p399, %s29, 3
          %s401 = smul.addr %s400, 4
          %s402 = smul.addr %s401, 8
          %s403 = scalar_lea.vmem %s3, %s402
        $region36: #{tpu_custom_call.1} parent=19 // pred_fallthru
          _
        // Predicated region
        $region37: #{tpu_custom_call.1} parent=19 // pred_check
          %p404 = pneg %p165
        $region38: #{tpu_custom_call.1} parent=19 // pred_check_branch
          %406 = sbr.rel (%p404) target = $region40
        $region39: #{tpu_custom_call.1} parent=19 // pred_region
          %p407 = scmp.lt.s32.totalorder %s29, 3
          %s408 = scalar_select %p407, %s29, 3
          %s409 = scalar_lea.vmem %s4, %s408
        $region40: #{tpu_custom_call.1} parent=19 // pred_fallthru
          _
        // Predicated region
        $region41: #{tpu_custom_call.1} parent=19 // pred_check
          %p410 = pneg %p191
        $region42: #{tpu_custom_call.1} parent=19 // pred_check_branch
          %412 = sbr.rel (%p410) target = $region44
        $region43: #{tpu_custom_call.1} parent=19 // pred_region
          %p413 = scmp.lt.s32.totalorder %s29, 3
          %s414 = scalar_select %p413, %s29, 3
          %s415 = smul.addr %s414, 4
          %s416 = smul.addr %s415, 8
          %s417 = scalar_lea.vmem %s5, %s416
        $region44: #{tpu_custom_call.1} parent=19 // pred_fallthru
          _
        // Predicated region
        $region45: #{tpu_custom_call.1} parent=19 // pred_check
          %p418 = pneg %p217
        $region46: #{tpu_custom_call.1} parent=19 // pred_check_branch
          %420 = sbr.rel (%p418) target = $region48
        $region47: #{tpu_custom_call.1} parent=19 // pred_region
          %p421 = scmp.lt.s32.totalorder %s29, 3
          %s422 = scalar_select %p421, %s29, 3
          %s423 = scalar_lea.vmem %s6, %s422
        $region48: #{tpu_custom_call.1} parent=19 // pred_fallthru
          _
        // Predicated region
        $region49: #{tpu_custom_call.1} parent=19 // pred_check
          %p424 = pneg %p243
        $region50: #{tpu_custom_call.1} parent=19 // pred_check_branch
          %426 = sbr.rel (%p424) target = $region52
        $region51: #{tpu_custom_call.1} parent=19 // pred_region
          %p427 = scmp.lt.s32.totalorder %s29, 3
          %s428 = scalar_select %p427, %s29, 3
          %s429 = smul.addr %s428, 4
          %s430 = smul.addr %s429, 8
          %s431 = scalar_lea.vmem %s7, %s430
        $region52: #{tpu_custom_call.1} parent=19 // pred_fallthru
          _
        // Predicated region
        $region53: #{tpu_custom_call.1} parent=19 // pred_check
          %p432 = pneg %p269
        $region54: #{tpu_custom_call.1} parent=19 // pred_check_branch
          %434 = sbr.rel (%p432) target = $region56
        $region55: #{tpu_custom_call.1} parent=19 // pred_region
          %p435 = scmp.lt.s32.totalorder %s29, 3
          %s436 = scalar_select %p435, %s29, 3
          %s437 = scalar_lea.vmem %s8, %s436
        $region56: #{tpu_custom_call.1} parent=19 // pred_fallthru
          _
        // Predicated region
        $region57: #{tpu_custom_call.1} parent=19 // pred_check
          %p438 = pneg %p295
        $region58: #{tpu_custom_call.1} parent=19 // pred_check_branch
          %440 = sbr.rel (%p438) target = $region60
        $region59: #{tpu_custom_call.1} parent=19 // pred_region
          %p441 = scmp.lt.s32.totalorder %s29, 3
          %s442 = scalar_select %p441, %s29, 3
          %s443 = smul.addr %s442, 8
          %s444 = scalar_lea.vmem %s9, %s443
        $region60: #{tpu_custom_call.1} parent=19 // pred_fallthru
          _
      $region20: #{tpu_custom_call.1} parent=5 // pred_fallthru
        _
      %p445 = scmp.le.s32.totalorder 1, %s20
      %p446 = scmp.lt.s32.totalorder %s20, 9
      %p447 = pnand %p445, %p446
      %p448 = pneg %p447
      // Predicated region
      $region61: #{tpu_custom_call.1} parent=5 // pred_check
        _
      $region62: #{tpu_custom_call.1} parent=5 // pred_check_branch
        %450 = sbr.rel (%p447) target = $region64
      $region63: #{tpu_custom_call.1} parent=5 // pred_region
        %s451 = ssub.s32 %s20, 1
        %p452 = scmp.lt.s32.totalorder %s30, 1
        %s453 = scalar_select %p452, %s30, 1
        %p454 = scmp.lt.s32.totalorder %s31, 0
        %s455 = scalar_select %p454, %s31, 0
        %s456 = sadd.s32 %s455, %s453
        %s457 = smul.addr %s456, 8
        %s458 = scalar_lea.vmem %s0, %s457
        %p459 = pneg %p67
        %p460 = pneg %p64
        %p461 = scmp.lt.s32.totalorder %s30, 1
        %s462 = scalar_select %p461, %s30, 1
        %s463 = smul.addr %s462, 8
        %s464 = scalar_lea.vmem %s1, %s463
        %p465 = pneg %p93
        %p466 = pneg %p90
        %p467 = scmp.lt.s32.totalorder %s30, 1
        %s468 = scalar_select %p467, %s30, 1
        %s469 = smul.addr %s468, 8
        %s470 = scalar_lea.vmem %s2, %s469
        %p471 = pneg %p119
        %p472 = pneg %p116
        %p473 = scmp.lt.s32.totalorder %s32, 3
        %s474 = scalar_select %p473, %s32, 3
        %s475 = smul.addr %s474, 4
        %s476 = smul.addr %s475, 8
        %s477 = scalar_lea.vmem %s3, %s476
        %p478 = pneg %p145
        %p479 = pneg %p142
        %p480 = scmp.lt.s32.totalorder %s32, 3
        %s481 = scalar_select %p480, %s32, 3
        %s482 = scalar_lea.vmem %s4, %s481
        %p483 = pneg %p171
        %p484 = pneg %p168
        %p485 = scmp.lt.s32.totalorder %s32, 3
        %s486 = scalar_select %p485, %s32, 3
        %s487 = smul.addr %s486, 4
        %s488 = smul.addr %s487, 8
        %s489 = scalar_lea.vmem %s5, %s488
        %p490 = pneg %p197
        %p491 = pneg %p194
        %p492 = scmp.lt.s32.totalorder %s32, 3
        %s493 = scalar_select %p492, %s32, 3
        %s494 = scalar_lea.vmem %s6, %s493
        %p495 = pneg %p223
        %p496 = pneg %p220
        %p497 = scmp.lt.s32.totalorder %s32, 3
        %s498 = scalar_select %p497, %s32, 3
        %s499 = smul.addr %s498, 4
        %s500 = smul.addr %s499, 8
        %s501 = scalar_lea.vmem %s7, %s500
        %p502 = pneg %p249
        %p503 = pneg %p246
        %p504 = scmp.lt.s32.totalorder %s32, 3
        %s505 = scalar_select %p504, %s32, 3
        %s506 = scalar_lea.vmem %s8, %s505
        %p507 = pneg %p275
        %p508 = pneg %p272
        %p509 = scmp.lt.s32.totalorder %s32, 3
        %s510 = scalar_select %p509, %s32, 3
        %s511 = smul.addr %s510, 8
        %s512 = scalar_lea.vmem %s9, %s511
        %p513 = pneg %p301
        %p514 = pneg %p298
        %p515 = pneg %p322
        %p516 = pneg %p319
        %p517 = pneg %p350
        %p518 = pneg %p347
        %s519 = sand.u32 %s337, 1
        %s520 = scalar_lea.sflag [#allocation6], %s519
        %s521 = sand.u32 %s337, 1
        %s522 = smul.addr %s521, 8
        %s523 = scalar_lea.vmem [#allocation5], %s522
        %p524 = scmp.lt.s32.totalorder %s30, 1
        %s525 = scalar_select %p524, %s30, 1
        %p526 = scmp.lt.s32.totalorder %s31, 0
        %s527 = scalar_select %p526, %s31, 0
        %s528 = sadd.s32 %s527, %s525
        %s529 = smul.addr %s528, 8
        %s530 = scalar_lea.vmem %s0, %s529
        %p531 = scmp.lt.s32.totalorder %s30, 1
        %s532 = scalar_select %p531, %s30, 1
        %s533 = smul.addr %s532, 8
        %s534 = scalar_lea.vmem %s1, %s533
        %p535 = scmp.lt.s32.totalorder %s30, 1
        %s536 = scalar_select %p535, %s30, 1
        %s537 = smul.addr %s536, 8
        %s538 = scalar_lea.vmem %s2, %s537
        %p539 = scmp.lt.s32.totalorder %s32, 3
        %s540 = scalar_select %p539, %s32, 3
        %s541 = smul.addr %s540, 4
        %s542 = smul.addr %s541, 8
        %s543 = scalar_lea.vmem %s3, %s542
        %p544 = scmp.lt.s32.totalorder %s32, 3
        %s545 = scalar_select %p544, %s32, 3
        %s546 = scalar_lea.vmem %s4, %s545
        %p547 = scmp.lt.s32.totalorder %s32, 3
        %s548 = scalar_select %p547, %s32, 3
        %s549 = smul.addr %s548, 4
        %s550 = smul.addr %s549, 8
        %s551 = scalar_lea.vmem %s5, %s550
        %p552 = scmp.lt.s32.totalorder %s32, 3
        %s553 = scalar_select %p552, %s32, 3
        %s554 = scalar_lea.vmem %s6, %s553
        %p555 = scmp.lt.s32.totalorder %s32, 3
        %s556 = scalar_select %p555, %s32, 3
        %s557 = smul.addr %s556, 4
        %s558 = smul.addr %s557, 8
        %s559 = scalar_lea.vmem %s7, %s558
        %p560 = scmp.lt.s32.totalorder %s32, 3
        %s561 = scalar_select %p560, %s32, 3
        %s562 = scalar_lea.vmem %s8, %s561
        %p563 = scmp.lt.s32.totalorder %s32, 3
        %s564 = scalar_select %p563, %s32, 3
        %s565 = smul.addr %s564, 8
        %s566 = scalar_lea.vmem %s9, %s565
        %p567 = scmp.eq.s32.totalorder %s32, 0
        // Predicated region
        $region65: #{tpu_custom_call.1} parent=63 // pred_check
          %p568 = pneg %p567
        $region66: #{tpu_custom_call.1} parent=63 // pred_check_branch
          %570 = sbr.rel (%p568) target = $region68
        $region67: #{tpu_custom_call.1} parent=63 // pred_region
          %vm571 = vcmask 261120
          %572 = vst.msk [vmem:[#allocation4] sm:$0xff] %vm571, 0.0
        $region68: #{tpu_custom_call.1} parent=63 // pred_fallthru
          _
        %v573 = vld [vmem:[%s530] sm:$0xff]
        %p574 = scmp.eq.s32.totalorder %s31, 0
        // Predicated region
        $region69: #{tpu_custom_call.1} parent=63 // pred_check
          %p575 = pneg %p574
        $region70: #{tpu_custom_call.1} parent=63 // pred_check_branch
          %577 = sbr.rel (%p575) target = $region72
        $region71: #{tpu_custom_call.1} parent=63 // pred_region
          %v578 = vld [vmem:[%s534] sm:$0xff]
          %v579 = vld [vmem:[%s538] sm:$0xff]
          %v580 = vld [vmem:[%s551] sm:$0xff]
          %v581 = vld [vmem:[%s551 + $0x8] sm:$0xff]
          %v582 = vld [vmem:[%s551 + $0x10] sm:$0xff]
          %v583 = vld [vmem:[%s551 + $0x18] sm:$0xff]
          %v584 = vld [vmem:[%s554] sm:$0x1]
          %v586 = vperm.slane %v584, 0
          %vm588 = vcmask 261120
          %v590 = vsel %vm588, %v578, 0
          %592 = vmatpush.msra.mxu0 0.0
          %593 = vmatpush.msra.mxu0 0.0
          %594 = vmatpush.msra.mxu0 0.0
          %595 = vmatpush.msra.mxu0 0.0
          %596 = vmatpush.msra.mxu0 0.0
          %597 = vmatpush.msra.mxu0 0.0
          %598 = vmatpush.msra.mxu0 0.0
          %599 = vmatpush.msra.mxu0 0.0
          %600 = vmatpush.msra.mxu0 0.0
          %601 = vmatpush.msra.mxu0 0.0
          %602 = vmatpush.msra.mxu0 0.0
          %603 = vmatpush.msra.mxu0 0.0
          %604 = vmatpush.msra.mxu0 %v583
          %605 = vmatpush.msra.mxu0 %v582
          %606 = vmatpush.msra.mxu0 %v581
          %607 = vmatpush.msra.mxu0 %v580
          %608 = vmatmul.f32.gmra.mxu0 %v590
          %v609 = vpop.f32.mrf.mxu0
          %v610 = vadd.f32 %v586, %v609
          %611 = vdwg.mxu0
          %v612 = vld [vmem:[%s559] sm:$0xff]
          %v613 = vld [vmem:[%s559 + $0x8] sm:$0xff]
          %v614 = vld [vmem:[%s559 + $0x10] sm:$0xff]
          %v615 = vld [vmem:[%s559 + $0x18] sm:$0xff]
          %v616 = vld [vmem:[%s562] sm:$0x1]
          %v618 = vperm.slane %v616, 0
          %v621 = vsel %vm588, %v579, 0
          %623 = vmatpush.msra.mxu0 0.0
          %624 = vmatpush.msra.mxu0 0.0
          %625 = vmatpush.msra.mxu0 0.0
          %626 = vmatpush.msra.mxu0 0.0
          %627 = vmatpush.msra.mxu0 0.0
          %628 = vmatpush.msra.mxu0 0.0
          %629 = vmatpush.msra.mxu0 0.0
          %630 = vmatpush.msra.mxu0 0.0
          %631 = vmatpush.msra.mxu0 0.0
          %632 = vmatpush.msra.mxu0 0.0
          %633 = vmatpush.msra.mxu0 0.0
          %634 = vmatpush.msra.mxu0 0.0
          %635 = vmatpush.msra.mxu0 %v615
          %636 = vmatpush.msra.mxu0 %v614
          %637 = vmatpush.msra.mxu0 %v613
          %638 = vmatpush.msra.mxu0 %v612
          %639 = vmatmul.f32.gmra.mxu0 %v621
          %v640 = vpop.f32.mrf.mxu0
          %v641 = vadd.f32 %v618, %v640
          %642 = vdwg.mxu0
          %s643 = smul.u32 %s32, 8
          %s644 = scalar_lea.vmem [#allocation2], %s643
          %vm645 = vcmask 64512
          %646 = vst.msk [vmem:[%s644] sm:$0xff] %vm645, %v610
          %s647 = scalar_lea.vmem [#allocation3], %s643
          %648 = vst.msk [vmem:[%s647] sm:$0xff] %vm645, %v641
        $region72: #{tpu_custom_call.1} parent=63 // pred_fallthru
          _
        %s649 = smul.u32 %s32, 8
        %s650 = scalar_lea.vmem [#allocation2], %s649
        %v651 = vld [vmem:[%s650] sm:$0xff]
        %s652 = scalar_lea.vmem [#allocation3], %s649
        %v653 = vld [vmem:[%s652] sm:$0xff]
        %v654 = vld [vmem:[%s543] sm:$0xff]
        %v655 = vld [vmem:[%s543 + $0x8] sm:$0xff]
        %v656 = vld [vmem:[%s543 + $0x10] sm:$0xff]
        %v657 = vld [vmem:[%s543 + $0x18] sm:$0xff]
        %v658 = vld [vmem:[%s546] sm:$0x1]
        %v660 = vperm.slane %v658, 0
        %vm662 = vcmask 261120
        %v664 = vsel %vm662, %v573, 0
        %666 = vmatpush.msra.mxu0 0.0
        %667 = vmatpush.msra.mxu0 0.0
        %668 = vmatpush.msra.mxu0 0.0
        %669 = vmatpush.msra.mxu0 0.0
        %670 = vmatpush.msra.mxu0 0.0
        %671 = vmatpush.msra.mxu0 0.0
        %672 = vmatpush.msra.mxu0 0.0
        %673 = vmatpush.msra.mxu0 0.0
        %674 = vmatpush.msra.mxu0 0.0
        %675 = vmatpush.msra.mxu0 0.0
        %676 = vmatpush.msra.mxu0 0.0
        %677 = vmatpush.msra.mxu0 0.0
        %678 = vmatpush.msra.mxu0 %v657
        %679 = vmatpush.msra.mxu0 %v656
        %680 = vmatpush.msra.mxu0 %v655
        %681 = vmatpush.msra.mxu0 %v654
        %682 = vmatmul.f32.gmra.mxu0 %v664
        %v683 = vpop.f32.mrf.mxu0
        %v684 = vadd.f32 %v660, %v683
        %685 = vdwg.mxu0
        %v686 = vmul.f32 %v684, 0.35355338
        %vm687 = vcmask 64512
        %v689 = vsel %vm687, %v686, 0
        %v692 = vsel %vm687, %v651, 0
        %694 = vmatpush.xpose.msra.mxu0 0.0
        %695 = vmatpush.xpose.msra.mxu0 0.0
        %696 = vmatpush.xpose.msra.mxu0 0.0
        %697 = vmatpush.xpose.msra.mxu0 0.0
        %698 = vmatpush.xpose.msra.mxu0 0.0
        %699 = vmatpush.xpose.msra.mxu0 0.0
        %700 = vmatpush.xpose.msra.mxu0 0.0
        %701 = vmatpush.xpose.msra.mxu0 0.0
        %702 = vmatpush.xpose.msra.mxu0 0.0
        %703 = vmatpush.xpose.msra.mxu0 0.0
        %704 = vmatpush.xpose.msra.mxu0 0.0
        %705 = vmatpush.xpose.msra.mxu0 0.0
        %706 = vmatpush.xpose.msra.mxu0 0.0
        %707 = vmatpush.xpose.msra.mxu0 0.0
        %708 = vmatpush.xpose.msra.mxu0 0.0
        %709 = vmatpush.xpose.msra.mxu0 %v692
        %710 = vmatmul.f32.gmra.mxu0 %v689
        %v711 = vpop.f32.mrf.mxu0
        %v712 = vadd.f32 0.0, %v711
        %713 = vdwg.mxu0
        %v714 = vsel %vm687, %v712, -inf
        %715 = vmax.xlane.f32.xlu0 %v714
        %v716 = vpop.xlane.xlu0 %715
        %v717 = vsub.f32 %v712, %v716
        %v718 = vmul.f32 %v717, 1.442695
        %v719 = vpow.pop %v718
        %v720 = vsel %vm687, %v719, 0.0
        %721 = vadd.xlane.f32.xlu0 %v720
        %v722 = vpop.xlane.xlu0 %721
        %v724 = vsel %vm687, %v719, 0
        %726 = vmatpush.msra.mxu0 0.0
        %727 = vmatpush.msra.mxu0 0.0
        %728 = vmatpush.msra.mxu0 0.0
        %729 = vmatpush.msra.mxu0 0.0
        %730 = vmatpush.msra.mxu0 0.0
        %731 = vmatpush.msra.mxu0 0.0
        %732 = vmatpush.msra.mxu0 0.0
        %733 = vmatpush.msra.mxu0 0.0
        %734 = vmatpush.msra.mxu0 0.0
        %735 = vmatpush.msra.mxu0 0.0
        %736 = vmatpush.msra.mxu0 0.0
        %737 = vmatpush.msra.mxu0 0.0
        %738 = vmatpush.msra.mxu0 0.0
        %739 = vmatpush.msra.mxu0 0.0
        %740 = vmatpush.msra.mxu0 0.0
        %741 = vmatpush.msra.mxu0 %v653
        %742 = vmatmul.f32.gmra.mxu0 %v724
        %v743 = vpop.f32.mrf.mxu0
        %v744 = vadd.f32 0.0, %v743
        %745 = vdwg.mxu0
        %v746 = vrcp.pop %v722
        %v747 = vmul.f32 %v744, %v746
        %v748 = vld [vmem:[#allocation4] sm:$0xff]
        %v749 = vld [vmem:[%s566] sm:$0xff]
        %v751 = vsel %vm687, %v747, 0
        %753 = vmatpush.msra.mxu0 0.0
        %754 = vmatpush.msra.mxu0 0.0
        %755 = vmatpush.msra.mxu0 0.0
        %756 = vmatpush.msra.mxu0 0.0
        %757 = vmatpush.msra.mxu0 0.0
        %758 = vmatpush.msra.mxu0 0.0
        %759 = vmatpush.msra.mxu0 0.0
        %760 = vmatpush.msra.mxu0 0.0
        %761 = vmatpush.msra.mxu0 0.0
        %762 = vmatpush.msra.mxu0 0.0
        %763 = vmatpush.msra.mxu0 0.0
        %764 = vmatpush.msra.mxu0 0.0
        %765 = vmatpush.msra.mxu0 0.0
        %766 = vmatpush.msra.mxu0 0.0
        %767 = vmatpush.msra.mxu0 0.0
        %768 = vmatpush.msra.mxu0 %v749
        %769 = vmatmul.f32.gmra.mxu0 %v751
        %v770 = vpop.f32.mrf.mxu0
        %v771 = vadd.f32 0.0, %v770
        %772 = vdwg.mxu0
        %v773 = vadd.f32 %v748, %v771
        %774 = vst.msk [vmem:[#allocation4] sm:$0xff] %vm662, %v773
        %p775 = scmp.eq.s32.totalorder %s32, 3
        // Predicated region
        $region73: #{tpu_custom_call.1} parent=63 // pred_check
          %p776 = pneg %p775
        $region74: #{tpu_custom_call.1} parent=63 // pred_check_branch
          %778 = sbr.rel (%p776) target = $region76
        $region75: #{tpu_custom_call.1} parent=63 // pred_region
          %v779 = vld [vmem:[#allocation4] sm:$0xff]
          %v780 = vld [vmem:[%s10] sm:$0x1]
          %v782 = vperm.slane %v780, 0
          %v784 = vadd.f32 %v779, %v782
          %785 = vst.msk [vmem:[%s523] sm:$0xff] %vm662, %v784
        $region76: #{tpu_custom_call.1} parent=63 // pred_fallthru
          _
        %s786 = sand.u32 %s337, 1
        %s787 = scalar_lea.sflag [#allocation6], %s786
        %s788 = sand.u32 %s337, 1
        %s789 = smul.addr %s788, 8
        %s790 = scalar_lea.vmem [#allocation5], %s789
        // Predicated region
        $region77: #{tpu_custom_call.1} parent=63 // pred_check
          %p791 = pneg %p347
        $region78: #{tpu_custom_call.1} parent=63 // pred_check_branch
          %793 = sbr.rel (%p791) target = $region80
        $region79: #{tpu_custom_call.1} parent=63 // pred_region
          %795 = vsyncadd %s787, 0
          %s796 = sadd.s32 %s31, %s30
          %s797 = smul.addr %s796, 8
          %s798 = scalar_lea.hbm %s11, %s797
          %s800 = sshll.u32 %s790, 4
          %s801 = int_to_ptr.vmem [resolvable:$true] %s800
          %s802 = sshll.u32 %s798, 4
          %s803 = int_to_ptr.hbm [resolvable:$true] %s802
          %805 = dma.vmem_to_hbm [thread:$0]  %s801, 128, %s803, %s787
        $region80: #{tpu_custom_call.1} parent=63 // pred_fallthru
          _
      $region64: #{tpu_custom_call.1} parent=5 // pred_fallthru
        _
      %p806 = scmp.le.s32.totalorder 2, %s20
      // Predicated region
      $region81: #{tpu_custom_call.1} parent=5 // pred_check
        %p807 = pneg %p806
      $region82: #{tpu_custom_call.1} parent=5 // pred_check_branch
        %809 = sbr.rel (%p807) target = $region84
      $region83: #{tpu_custom_call.1} parent=5 // pred_region
        %s810 = ssub.s32 %s20, 2
        // Predicated region
        $region85: #{tpu_custom_call.1} parent=83 // pred_check
          %p811 = pneg %p353
        $region86: #{tpu_custom_call.1} parent=83 // pred_check_branch
          %813 = sbr.rel (%p811) target = $region88
        $region87: #{tpu_custom_call.1} parent=83 // pred_region
          %s814 = sand.u32 %s338, 1
          %s815 = scalar_lea.sflag [#allocation6], %s814
          %s816 = sand.u32 %s338, 1
          %s817 = smul.addr %s816, 8
          %s818 = scalar_lea.vmem [#allocation5], %s817
          %820 = dma.done %s815, 128
        $region88: #{tpu_custom_call.1} parent=83 // pred_fallthru
          _
      $region84: #{tpu_custom_call.1} parent=5 // pred_fallthru
        _
    $region6: #{tpu_custom_call.1} parent=1 // loop_footer
      %s24 = sadd.s32 1, %s20
    $region7: #{tpu_custom_call.1} parent=1 // loop_footer_branch
      %19 = sbr.rel target = $region3
    $region8: #{tpu_custom_call.1} parent=1 // loop_exit
      _
    %821 = vsyncpa [#allocation6], 1
    %s822 = scalar_lea.sflag [#allocation6], 1
    %823 = vsyncpa %s822, 1

</llo_original>
